<compile_context>
chip_gen: v5e
topology: v5e:2x2
jax: 0.10.0
libtpu: 0.0.40
codegen_flags: <defaults>
</compile_context>

<pallas_src>
import numpy as np
import jax
import jax.numpy as jnp
from jax import lax
from jax.experimental import pallas as pl
from jax.experimental.pallas import tpu as pltpu

S1_DIM, S2_DIM, A_DIM = 8, 128, 64            # fixed by torch.split([8,128,64], dim=1)
IN_DIM = S1_DIM + S2_DIM + A_DIM              # 200
IN_PAD = 256                                  # lane-dense (multiple of 128) x stream
S1_OUT, S2_OUT, A_OUT = 28, 100, 128
FUSED = S1_OUT + S2_OUT + A_OUT               # 256 (fills the 256-wide MXU)
L3_OUT = 128                                  # conv-only third layer output lanes
NEG_BIG = -3.0e38                             # "no ReLU on this lane" floor


def _round_up(n, m):
    return ((n + m - 1) // m) * m


def _cdiv(a, b):
    return -(-a // b)


# ---------------------------------------------------------------------------
# glue: single-channel (kh,kw) "same"-padded conv on a 10x10 image as an exact
# dense (100,100) matrix, so out_flat = in_flat @ M  (cross-correlation, as in
# torch.nn.Conv2d / lax.conv).
# ---------------------------------------------------------------------------
def _conv_to_matrix(w2d, H=10, W=10):
    w2d = np.asarray(w2d, dtype=np.float32)
    kh, kw = w2d.shape
    ph, pw = kh // 2, kw // 2
    M = np.zeros((H * W, H * W), dtype=np.float32)
    for oi in range(H):
        for oj in range(W):
            for di in range(kh):
                for dj in range(kw):
                    ii, ij = oi + di - ph, oj + dj - pw
                    if 0 <= ii < H and 0 <= ij < W:
                        M[ii * W + ij, oi * W + oj] = w2d[di, dj]
    return M


# ---------------------------------------------------------------------------
# Pallas kernel: one batch tile of the full Critic forward.
# ---------------------------------------------------------------------------
def critic_kernel(x_ref, w1_ref, b1_ref, f1_ref, w2_ref, b2_ref, f2_ref,
                  w3_ref, b3_ref, wq12_ref, wq3_ref, bq_ref, o_ref):
    f32, bf16 = jnp.float32, jnp.bfloat16

    # L1: fused first linears [s1 8->28 | s2 128->100 | a 64->128].
    # x is already bf16 and zero-padded to 256 lanes (lane-dense MXU feed).
    h1 = jnp.dot(x_ref[...], w1_ref[...], preferred_element_type=f32) + b1_ref[...]
    h1 = jnp.maximum(h1, f1_ref[...])          # ReLU on s2/a lanes only (floor=-3e38 on s1)

    # L2: fused [s1 28->28 | conv7x7 (as dense 100->100) | a 128->128].
    h2 = jnp.dot(h1.astype(bf16), w2_ref[...], preferred_element_type=f32) + b2_ref[...]
    h2 = jnp.maximum(h2, f2_ref[...])          # ReLU on s1/s2 lanes only (floor=-3e38 on a)

    # L3: conv5x5 (as dense) on the s2 lanes only, 256 -> 128, then ReLU.
    # s1/a lanes are pure passthrough in the reference, so they skip this matmul.
    h3 = jnp.dot(h2.astype(bf16), w3_ref[...], preferred_element_type=f32) + b3_ref[...]
    h3 = jnp.maximum(h3, 0.0)

    # Final Linear(256->1): VPU multiply + lane reduce (no N=1 MXU matmul),
    # split between passthrough lanes (s1, a from h2) and s2 lanes (from h3),
    # then tanh on the EUP.  All in f32.
    q = (jnp.sum(h2 * wq12_ref[...], axis=-1, keepdims=True)
         + jnp.sum(h3 * wq3_ref[...], axis=-1, keepdims=True)
         + bq_ref[0, 0])
    o_ref[...] = jnp.tanh(q)


def critic_forward(x, kargs, *, block_b=2048):
    """x: [B, 200] f32 (or bf16); kargs: output of build_kernel_args."""
    B = x.shape[0]
    w1, b1, f1, w2, b2, f2, w3, b3, wq12, wq3, bq = kargs

    # Batch tiling: big tiles amortize the ~0.35us per-grid-step overhead; force
    # >=2 grid steps when the batch allows it so a v7x megacore can shard the
    # "parallel" batch axis across both TensorCores (and double-buffering stays
    # alive).  tb is a multiple of 16 for bf16 sublane packing.
    tb_req = max(16, _round_up(block_b, 16))
    num_tiles = max(1, _cdiv(B, tb_req))
    if num_tiles == 1 and B >= 32:
        num_tiles = 2
    tb = _round_up(_cdiv(B, num_tiles), 16)
    Bp = tb * num_tiles

    # x is the only per-row HBM stream: cast to bf16 (the MXU consumes it as
    # bf16 anyway) and zero-pad lanes 200 -> 256 so loads are lane-dense.
    xp = jnp.pad(x.astype(jnp.bfloat16), ((0, Bp - B), (0, IN_PAD - IN_DIM)))

    in_specs = [
        pl.BlockSpec((tb, IN_PAD), lambda i: (i, 0)),        # x: streamed per tile
        pl.BlockSpec((IN_PAD, FUSED), lambda i: (0, 0)),     # weights/consts: VMEM-resident
        pl.BlockSpec((1, FUSED), lambda i: (0, 0)),          # b1
        pl.BlockSpec((1, FUSED), lambda i: (0, 0)),          # floor1
        pl.BlockSpec((FUSED, FUSED), lambda i: (0, 0)),      # w2
        pl.BlockSpec((1, FUSED), lambda i: (0, 0)),          # b2
        pl.BlockSpec((1, FUSED), lambda i: (0, 0)),          # floor2
        pl.BlockSpec((FUSED, L3_OUT), lambda i: (0, 0)),     # w3 (conv-only)
        pl.BlockSpec((1, L3_OUT), lambda i: (0, 0)),         # b3
        pl.BlockSpec((1, FUSED), lambda i: (0, 0)),          # wq (s1/a lanes)
        pl.BlockSpec((1, L3_OUT), lambda i: (0, 0)),         # wq (s2 lanes)
        pl.BlockSpec(memory_space=pltpu.MemorySpace.SMEM),   # bq scalar
    ]
    out_specs = pl.BlockSpec((tb, 1), lambda i: (i, 0))

    weight_bytes = ((w1.size + w2.size + w3.size) * 2
                    + (b1.size + f1.size + b2.size + f2.size + b3.size
                       + wq12.size + wq3.size + bq.size) * 4)
    cost = pl.CostEstimate(
        flops=int(2 * Bp * (IN_PAD * FUSED + FUSED * FUSED + FUSED * L3_OUT
                            + FUSED + L3_OUT)),
        transcendentals=int(Bp),
        bytes_accessed=int(Bp * IN_PAD * 2 + Bp * 4 + weight_bytes),
    )

    out = pl.pallas_call(
        critic_kernel,
        out_shape=jax.ShapeDtypeStruct((Bp, 1), jnp.float32),
        grid=(num_tiles,),
        in_specs=in_specs,
        out_specs=out_specs,
        compiler_params=pltpu.CompilerParams(
            dimension_semantics=("parallel",),
            vmem_limit_bytes=32 * 1024 * 1024),
        cost_estimate=cost,
    )(xp, w1, b1, f1, w2, b2, f2, w3, b3, wq12, wq3, bq)
    return out[:B]


# ---------------------------------------------------------------------------
# deterministic parameter init (PyTorch-style U(-1/sqrt(fan_in), 1/sqrt(fan_in)))
# ---------------------------------------------------------------------------
def init_raw_params(key):
    def linear(k, fan_in, fan_out):
        k1, k2 = jax.random.split(k)
        bound = 1.0 / np.sqrt(fan_in)
        w = jax.random.uniform(k1, (fan_in, fan_out), jnp.float32, -bound, bound)
        b = jax.random.uniform(k2, (1, fan_out), jnp.float32, -bound, bound)
        return w, b

    ks = jax.random.split(key, 9)
    p = {}
    p['w_s1a'], p['b_s1a'] = linear(ks[0], S1_DIM, S1_OUT)
    p['w_s1b'], p['b_s1b'] = linear(ks[1], S1_OUT, S1_OUT)
    p['w_s2'], p['b_s2'] = linear(ks[2], S2_DIM, S2_OUT)

    kc1w, kc1b = jax.random.split(ks[3])
    bnd = 1.0 / np.sqrt(1 * 7 * 7)
    p['conv1_w'] = jax.random.uniform(kc1w, (7, 7), jnp.float32, -bnd, bnd)
    p['conv1_b'] = jax.random.uniform(kc1b, (), jnp.float32, -bnd, bnd)

    kc2w, kc2b = jax.random.split(ks[4])
    bnd = 1.0 / np.sqrt(1 * 5 * 5)
    p['conv2_w'] = jax.random.uniform(kc2w, (5, 5), jnp.float32, -bnd, bnd)
    p['conv2_b'] = jax.random.uniform(kc2b, (), jnp.float32, -bnd, bnd)

    p['w_a1'], p['b_a1'] = linear(ks[5], A_DIM, A_OUT)
    p['w_a2'], p['b_a2'] = linear(ks[6], A_OUT, A_OUT)
    p['w_q'], p['b_q'] = linear(ks[7], FUSED, 1)
    return p


def build_kernel_args(p):
    """Pack branch weights into fused block-diagonal layers (host-side, once)."""
    f32 = np.float32
    m_c1 = _conv_to_matrix(p['conv1_w'])     # conv7x7 "same" as (100,100) dense
    m_c2 = _conv_to_matrix(p['conv2_w'])     # conv5x5 "same" as (100,100) dense

    o1, o2 = S1_OUT, S1_OUT + S2_OUT         # fused-lane boundaries: 28, 128
    i1, i2 = S1_DIM, S1_DIM + S2_DIM         # input boundaries: 8, 136

    # L1: blockdiag(w_s1a, w_s2, w_a1); input rows zero-padded 200 -> 256.
    w1 = np.zeros((IN_PAD, FUSED), f32)
    w1[:i1, :o1] = np.asarray(p['w_s1a'])
    w1[i1:i2, o1:o2] = np.asarray(p['w_s2'])
    w1[i2:IN_DIM, o2:] = np.asarray(p['w_a1'])
    b1 = np.zeros((1, FUSED), f32)
    b1[0, :o1] = np.asarray(p['b_s1a'])[0]
    b1[0, o1:o2] = np.asarray(p['b_s2'])[0]
    b1[0, o2:] = np.asarray(p['b_a1'])[0]
    f1 = np.zeros((1, FUSED), f32)
    f1[0, :o1] = NEG_BIG                     # s1: no ReLU after its first Linear

    # L2: blockdiag(w_s1b, conv7x7, w_a2).
    w2 = np.zeros((FUSED, FUSED), f32)
    w2[:o1, :o1] = np.asarray(p['w_s1b'])
    w2[o1:o2, o1:o2] = m_c1
    w2[o2:, o2:] = np.asarray(p['w_a2'])
    b2 = np.zeros((1, FUSED), f32)
    b2[0, :o1] = np.asarray(p['b_s1b'])[0]
    b2[0, o1:o2] = float(p['conv1_b'])
    b2[0, o2:] = np.asarray(p['b_a2'])[0]
    f2 = np.zeros((1, FUSED), f32)
    f2[0, o2:] = NEG_BIG                     # action: no ReLU after its second Linear

    # L3: conv5x5 block only (s1/a lanes are passthrough, read from h2 later).
    w3 = np.zeros((FUSED, L3_OUT), f32)
    w3[o1:o2, :S2_OUT] = m_c2
    b3 = np.zeros((1, L3_OUT), f32)
    b3[0, :S2_OUT] = float(p['conv2_b'])

    # Final Linear(256->1), split across the two activation sources.
    wq = np.asarray(p['w_q']).reshape(-1)    # concat order [s1 | s2 | a]
    wq12 = np.zeros((1, FUSED), f32)
    wq12[0, :o1] = wq[:o1]                   # s1 lanes, taken from h2
    wq12[0, o2:] = wq[o2:]                   # action lanes, taken from h2
    wq3 = np.zeros((1, L3_OUT), f32)
    wq3[0, :S2_OUT] = wq[o1:o2]              # s2 lanes, taken from h3
    bq = np.asarray(p['b_q']).reshape(1, 1)

    bf16 = jnp.bfloat16
    return (jnp.asarray(w1, bf16), jnp.asarray(b1), jnp.asarray(f1),
            jnp.asarray(w2, bf16), jnp.asarray(b2), jnp.asarray(f2),
            jnp.asarray(w3, bf16), jnp.asarray(b3),
            jnp.asarray(wq12), jnp.asarray(wq3), jnp.asarray(bq))


# ---------------------------------------------------------------------------
# plain-JAX f32 reference (real convs) for correctness checking
# ---------------------------------------------------------------------------
def reference_forward(x, p):
    s1 = x[:, :S1_DIM]
    s2 = x[:, S1_DIM:S1_DIM + S2_DIM]
    a = x[:, S1_DIM + S2_DIM:IN_DIM]

    s1n = s1 @ p['w_s1a'] + p['b_s1a']
    s1n = s1n @ p['w_s1b'] + p['b_s1b']
    s1n = jnp.maximum(s1n, 0.0)

    s2n = jnp.maximum(s2 @ p['w_s2'] + p['b_s2'], 0.0)
    img = s2n.reshape(-1, 1, 10, 10)
    img = lax.conv_general_dilated(
        img, p['conv1_w'][None, None], (1, 1), [(3, 3), (3, 3)],
        dimension_numbers=('NCHW', 'OIHW', 'NCHW')) + p['conv1_b']
    img = jnp.maximum(img, 0.0)
    img = lax.conv_general_dilated(
        img, p['conv2_w'][None, None], (1, 1), [(2, 2), (2, 2)],
        dimension_numbers=('NCHW', 'OIHW', 'NCHW')) + p['conv2_b']
    img = jnp.maximum(img, 0.0)
    s2n = img.reshape(-1, 100)

    an = jnp.maximum(a @ p['w_a1'] + p['b_a1'], 0.0)
    an = an @ p['w_a2'] + p['b_a2']

    q = jnp.concatenate([s1n, s2n, an], axis=1) @ p['w_q'] + p['b_q']
    return jnp.tanh(q)


if __name__ == "__main__":
    key = jax.random.PRNGKey(0)
    k_params, k_x1, k_x2 = jax.random.split(key, 3)

    params = init_raw_params(k_params)
    kargs = build_kernel_args(params)

    # Tolerances loosened vs pure-f32 because matmul operands are bf16
    # (accumulation stays f32); real layout/weight bugs would be O(0.1-1).
    rtol, atol = 3e-2, 3e-2

    # 1) small batch (single 16-row tile)
    x_small = jax.random.normal(k_x1, (4, IN_DIM), dtype=jnp.float32)
    q_k = jax.block_until_ready(critic_forward(x_small, kargs))
    q_r = jax.block_until_ready(reference_forward(x_small, params))
    assert q_k.shape == (4, 1)
    np.testing.assert_allclose(np.asarray(q_k), np.asarray(q_r), rtol=rtol, atol=atol)

    # 2) larger batch exercising the multi-step batch grid + padding
    x_big = jax.random.normal(k_x2, (300, IN_DIM), dtype=jnp.float32)
    q_k = jax.block_until_ready(critic_forward(x_big, kargs, block_b=128))
    q_r = jax.block_until_ready(reference_forward(x_big, params))
    assert q_k.shape == (300, 1)
    np.testing.assert_allclose(np.asarray(q_k), np.asarray(q_r), rtol=rtol, atol=atol)

    # 3) default (large-tile) path also gets >=2 grid steps for megacore sharding
    q_k = jax.block_until_ready(critic_forward(x_big, kargs))
    np.testing.assert_allclose(np.asarray(q_k), np.asarray(q_r), rtol=rtol, atol=atol)

    print("KERNEL_OK")
</pallas_src>

<mosaic_0001>
module attributes {stable_mosaic.version = 11 : i64} {
  func.func @critic_kernel(%arg0: i32, %arg1: memref<16x256xbf16, #tpu.memory_space<vmem>>, %arg2: memref<256x256xbf16, #tpu.memory_space<vmem>>, %arg3: memref<1x256xf32, #tpu.memory_space<vmem>>, %arg4: memref<1x256xf32, #tpu.memory_space<vmem>>, %arg5: memref<256x256xbf16, #tpu.memory_space<vmem>>, %arg6: memref<1x256xf32, #tpu.memory_space<vmem>>, %arg7: memref<1x256xf32, #tpu.memory_space<vmem>>, %arg8: memref<256x128xbf16, #tpu.memory_space<vmem>>, %arg9: memref<1x128xf32, #tpu.memory_space<vmem>>, %arg10: memref<1x256xf32, #tpu.memory_space<vmem>>, %arg11: memref<1x128xf32, #tpu.memory_space<vmem>>, %arg12: memref<1x1xf32, #tpu.memory_space<smem>>, %arg13: memref<16x1xf32, #tpu.memory_space<vmem>>) attributes {dimension_semantics = [#tpu.dimension_semantics<parallel>], iteration_bounds = array<i64: 1>, scalar_prefetch = 0 : i64, scratch_operands = 0 : i64, tpu.core_type = #tpu.core_type<tc>, window_params = [{transform_indices = @transform_0, window_bounds = array<i64: 16, 256>}, {pipeline_mode = #tpu.pipeline_mode<synchronous>, transform_indices = @transform_1, window_bounds = array<i64: 256, 256>}, {pipeline_mode = #tpu.pipeline_mode<synchronous>, transform_indices = @transform_2, window_bounds = array<i64: 1, 256>}, {pipeline_mode = #tpu.pipeline_mode<synchronous>, transform_indices = @transform_3, window_bounds = array<i64: 1, 256>}, {pipeline_mode = #tpu.pipeline_mode<synchronous>, transform_indices = @transform_4, window_bounds = array<i64: 256, 256>}, {pipeline_mode = #tpu.pipeline_mode<synchronous>, transform_indices = @transform_5, window_bounds = array<i64: 1, 256>}, {pipeline_mode = #tpu.pipeline_mode<synchronous>, transform_indices = @transform_6, window_bounds = array<i64: 1, 256>}, {pipeline_mode = #tpu.pipeline_mode<synchronous>, transform_indices = @transform_7, window_bounds = array<i64: 256, 128>}, {pipeline_mode = #tpu.pipeline_mode<synchronous>, transform_indices = @transform_8, window_bounds = array<i64: 1, 128>}, {pipeline_mode = #tpu.pipeline_mode<synchronous>, transform_indices = @transform_9, window_bounds = array<i64: 1, 256>}, {pipeline_mode = #tpu.pipeline_mode<synchronous>, transform_indices = @transform_10, window_bounds = array<i64: 1, 128>}, {transform_indices = @transform_11, window_bounds = array<i64: 1, 1>}, {transform_indices = @transform_12, window_bounds = array<i64: 16, 1>}]} {
    %c0 = arith.constant 0 : index
    %c0_0 = arith.constant 0 : index
    %0 = vector.load %arg1[%c0, %c0_0] : memref<16x256xbf16, #tpu.memory_space<vmem>>, vector<16x256xbf16>
    %c0_1 = arith.constant 0 : index
    %c0_2 = arith.constant 0 : index
    %1 = vector.load %arg2[%c0_1, %c0_2] : memref<256x256xbf16, #tpu.memory_space<vmem>>, vector<256x256xbf16>
    %cst = arith.constant dense<0.000000e+00> : vector<16x256xf32>
    %2 = tpu.matmul %0, %1, %cst {dimension_numbers = #tpu.dot_dimension_numbers<[1], [0], [0], [1], [0, 0, 1, 1], [], []>} : vector<16x256xbf16>, vector<256x256xbf16>, vector<16x256xf32> -> vector<16x256xf32>
    %c0_3 = arith.constant 0 : index
    %c0_4 = arith.constant 0 : index
    %3 = vector.load %arg3[%c0_3, %c0_4] : memref<1x256xf32, #tpu.memory_space<vmem>>, vector<1x256xf32>
    %4 = vector.broadcast %3 : vector<1x256xf32> to vector<16x256xf32>
    %5 = arith.addf %2, %4 : vector<16x256xf32>
    %c0_5 = arith.constant 0 : index
    %c0_6 = arith.constant 0 : index
    %6 = vector.load %arg4[%c0_5, %c0_6] : memref<1x256xf32, #tpu.memory_space<vmem>>, vector<1x256xf32>
    %7 = vector.broadcast %6 : vector<1x256xf32> to vector<16x256xf32>
    %8 = arith.maximumf %5, %7 : vector<16x256xf32>
    %9 = arith.truncf %8 : vector<16x256xf32> to vector<16x256xbf16>
    %c0_7 = arith.constant 0 : index
    %c0_8 = arith.constant 0 : index
    %10 = vector.load %arg5[%c0_7, %c0_8] : memref<256x256xbf16, #tpu.memory_space<vmem>>, vector<256x256xbf16>
    %cst_9 = arith.constant dense<0.000000e+00> : vector<16x256xf32>
    %11 = tpu.matmul %9, %10, %cst_9 {dimension_numbers = #tpu.dot_dimension_numbers<[1], [0], [0], [1], [0, 0, 1, 1], [], []>} : vector<16x256xbf16>, vector<256x256xbf16>, vector<16x256xf32> -> vector<16x256xf32>
    %c0_10 = arith.constant 0 : index
    %c0_11 = arith.constant 0 : index
    %12 = vector.load %arg6[%c0_10, %c0_11] : memref<1x256xf32, #tpu.memory_space<vmem>>, vector<1x256xf32>
    %13 = vector.broadcast %12 : vector<1x256xf32> to vector<16x256xf32>
    %14 = arith.addf %11, %13 : vector<16x256xf32>
    %c0_12 = arith.constant 0 : index
    %c0_13 = arith.constant 0 : index
    %15 = vector.load %arg7[%c0_12, %c0_13] : memref<1x256xf32, #tpu.memory_space<vmem>>, vector<1x256xf32>
    %16 = vector.broadcast %15 : vector<1x256xf32> to vector<16x256xf32>
    %17 = arith.maximumf %14, %16 : vector<16x256xf32>
    %18 = arith.truncf %17 : vector<16x256xf32> to vector<16x256xbf16>
    %c0_14 = arith.constant 0 : index
    %c0_15 = arith.constant 0 : index
    %19 = vector.load %arg8[%c0_14, %c0_15] : memref<256x128xbf16, #tpu.memory_space<vmem>>, vector<256x128xbf16>
    %cst_16 = arith.constant dense<0.000000e+00> : vector<16x128xf32>
    %20 = tpu.matmul %18, %19, %cst_16 {dimension_numbers = #tpu.dot_dimension_numbers<[1], [0], [0], [1], [0, 0, 1, 1], [], []>} : vector<16x256xbf16>, vector<256x128xbf16>, vector<16x128xf32> -> vector<16x128xf32>
    %c0_17 = arith.constant 0 : index
    %c0_18 = arith.constant 0 : index
    %21 = vector.load %arg9[%c0_17, %c0_18] : memref<1x128xf32, #tpu.memory_space<vmem>>, vector<1x128xf32>
    %22 = vector.broadcast %21 : vector<1x128xf32> to vector<16x128xf32>
    %23 = arith.addf %20, %22 : vector<16x128xf32>
    %cst_19 = arith.constant 0.000000e+00 : f32
    %24 = vector.broadcast %cst_19 : f32 to vector<16x128xf32>
    %25 = arith.maximumf %23, %24 : vector<16x128xf32>
    %c0_20 = arith.constant 0 : index
    %c0_21 = arith.constant 0 : index
    %26 = vector.load %arg10[%c0_20, %c0_21] : memref<1x256xf32, #tpu.memory_space<vmem>>, vector<1x256xf32>
    %27 = vector.broadcast %26 : vector<1x256xf32> to vector<16x256xf32>
    %28 = arith.mulf %17, %27 : vector<16x256xf32>
    %cst_22 = arith.constant dense<0.000000e+00> : vector<16xf32>
    %29 = vector.multi_reduction <add>, %28, %cst_22 [1] : vector<16x256xf32> to vector<16xf32>
    %30 = vector.shape_cast %29 : vector<16xf32> to vector<16x1xf32>
    %c0_23 = arith.constant 0 : index
    %c0_24 = arith.constant 0 : index
    %31 = vector.load %arg11[%c0_23, %c0_24] : memref<1x128xf32, #tpu.memory_space<vmem>>, vector<1x128xf32>
    %32 = vector.broadcast %31 : vector<1x128xf32> to vector<16x128xf32>
    %33 = arith.mulf %25, %32 : vector<16x128xf32>
    %cst_25 = arith.constant dense<0.000000e+00> : vector<16xf32>
    %34 = vector.multi_reduction <add>, %33, %cst_25 [1] : vector<16x128xf32> to vector<16xf32>
    %35 = vector.shape_cast %34 : vector<16xf32> to vector<16x1xf32>
    %36 = arith.addf %30, %35 : vector<16x1xf32>
    %c0_26 = arith.constant 0 : index
    %c0_27 = arith.constant 0 : index
    %37 = memref.load %arg12[%c0_26, %c0_27] : memref<1x1xf32, #tpu.memory_space<smem>>
    %38 = vector.broadcast %37 : f32 to vector<16x1xf32>
    %39 = arith.addf %36, %38 : vector<16x1xf32>
    %40 = math.tanh %39 : vector<16x1xf32>
    %c0_28 = arith.constant 0 : index
    %c0_29 = arith.constant 0 : index
    %41 = vector.load %arg13[%c0_28, %c0_29] : memref<16x1xf32, #tpu.memory_space<vmem>>, vector<16x1xf32>
    tpu.vector_store %arg13[%c0_28, %c0_29], %40 {strides = array<i32>} : memref<16x1xf32, #tpu.memory_space<vmem>>, vector<16x1xf32>,
    return
  }
  func.func @transform_0(%arg0: i32) -> (i32, i32) {
    %c0_i32 = arith.constant 0 : i32
    %c0_i32_0 = arith.constant 0 : i32
    return %arg0, %c0_i32 : i32, i32
  }
  func.func @transform_1(%arg0: i32) -> (i32, i32) {
    %c0_i32 = arith.constant 0 : i32
    %c0_i32_0 = arith.constant 0 : i32
    %c0_i32_1 = arith.constant 0 : i32
    return %c0_i32, %c0_i32_0 : i32, i32
  }
  func.func @transform_2(%arg0: i32) -> (i32, i32) {
    %c0_i32 = arith.constant 0 : i32
    %c0_i32_0 = arith.constant 0 : i32
    %c0_i32_1 = arith.constant 0 : i32
    return %c0_i32, %c0_i32_0 : i32, i32
  }
  func.func @transform_3(%arg0: i32) -> (i32, i32) {
    %c0_i32 = arith.constant 0 : i32
    %c0_i32_0 = arith.constant 0 : i32
    %c0_i32_1 = arith.constant 0 : i32
    return %c0_i32, %c0_i32_0 : i32, i32
  }
  func.func @transform_4(%arg0: i32) -> (i32, i32) {
    %c0_i32 = arith.constant 0 : i32
    %c0_i32_0 = arith.constant 0 : i32
    %c0_i32_1 = arith.constant 0 : i32
    return %c0_i32, %c0_i32_0 : i32, i32
  }
  func.func @transform_5(%arg0: i32) -> (i32, i32) {
    %c0_i32 = arith.constant 0 : i32
    %c0_i32_0 = arith.constant 0 : i32
    %c0_i32_1 = arith.constant 0 : i32
    return %c0_i32, %c0_i32_0 : i32, i32
  }
  func.func @transform_6(%arg0: i32) -> (i32, i32) {
    %c0_i32 = arith.constant 0 : i32
    %c0_i32_0 = arith.constant 0 : i32
    %c0_i32_1 = arith.constant 0 : i32
    return %c0_i32, %c0_i32_0 : i32, i32
  }
  func.func @transform_7(%arg0: i32) -> (i32, i32) {
    %c0_i32 = arith.constant 0 : i32
    %c0_i32_0 = arith.constant 0 : i32
    %c0_i32_1 = arith.constant 0 : i32
    return %c0_i32, %c0_i32_0 : i32, i32
  }
  func.func @transform_8(%arg0: i32) -> (i32, i32) {
    %c0_i32 = arith.constant 0 : i32
    %c0_i32_0 = arith.constant 0 : i32
    %c0_i32_1 = arith.constant 0 : i32
    return %c0_i32, %c0_i32_0 : i32, i32
  }
  func.func @transform_9(%arg0: i32) -> (i32, i32) {
    %c0_i32 = arith.constant 0 : i32
    %c0_i32_0 = arith.constant 0 : i32
    %c0_i32_1 = arith.constant 0 : i32
    return %c0_i32, %c0_i32_0 : i32, i32
  }
  func.func @transform_10(%arg0: i32) -> (i32, i32) {
    %c0_i32 = arith.constant 0 : i32
    %c0_i32_0 = arith.constant 0 : i32
    %c0_i32_1 = arith.constant 0 : i32
    return %c0_i32, %c0_i32_0 : i32, i32
  }
  func.func @transform_11(%arg0: i32) -> (i32, i32) {
    %c0_i32 = arith.constant 0 : i32
    %c0_i32_0 = arith.constant 0 : i32
    %c0_i32_1 = arith.constant 0 : i32
    return %c0_i32, %c0_i32_0 : i32, i32
  }
  func.func @transform_12(%arg0: i32) -> (i32, i32) {
    %c0_i32 = arith.constant 0 : i32
    %c0_i32_0 = arith.constant 0 : i32
    return %arg0, %c0_i32 : i32, i32
  }
}

</mosaic_0001>

<llo_original>
// kernel: tpu_custom_call.1
$region0: #{tpu_custom_call.1}
  #allocation0 [shape = 'u32[]', space=smem, size = 0x4, offset = 0x4, fixed_abs, tag = 'smem constant byte address 0x4 - core index']
  #allocation1 [shape = 'u32[72,128]{1,0:T(1,128)}', space=vmem, size = 0x9000, scoped, tag = 'internal scratch']
  #allocation2 [shape = 'f32[1,1]{1,0:T(1,128)S(6)}', space=smem, size = 0x200, scoped, tag = 'scoped memory for tpu_custom_call.1']
  %s0 = inlined_call_operand.hbm [shape: bf16[16,256], index: 0, kind: input, shape index: {}]
  %s1 = inlined_call_operand.hbm [shape: bf16[256,256], index: 1, kind: input, shape index: {}]
  %s2 = inlined_call_operand.vmem [shape: f32[1,256], index: 2, kind: input, shape index: {}]
  %s3 = inlined_call_operand.vmem [shape: f32[1,256], index: 3, kind: input, shape index: {}]
  %s4 = inlined_call_operand.hbm [shape: bf16[256,256], index: 4, kind: input, shape index: {}]
  %s5 = inlined_call_operand.vmem [shape: f32[1,256], index: 5, kind: input, shape index: {}]
  %s6 = inlined_call_operand.hbm [shape: f32[1,256], index: 6, kind: input, shape index: {}]
  %s7 = inlined_call_operand.hbm [shape: bf16[256,128], index: 7, kind: input, shape index: {}]
  %s8 = inlined_call_operand.vmem [shape: f32[1,128], index: 8, kind: input, shape index: {}]
  %s9 = inlined_call_operand.vmem [shape: f32[1,256], index: 9, kind: input, shape index: {}]
  %s10 = inlined_call_operand.vmem [shape: f32[1,128], index: 10, kind: input, shape index: {}]
  %s11 = inlined_call_operand.<no memory space> [shape: f32[1,1], index: 11, kind: input, shape index: {}]
  %s12 = inlined_call_operand.vmem [shape: f32[16,1], index: 12, kind: output, shape index: {}]
  %s13 = sld [smem:[#allocation0]]
  $region78: #{tpu_custom_call.1} parent=0
    _
  %s15 = ssub.s32 1, %s13
  %s16 = scalar_select 0, %s15, %s13
  %17 = sst [smem:[#allocation2]] %s11
  $region1: #{tpu_custom_call.1} parent=0
    #allocation3 [shape = 'u8[8192]{0}', space=vmem, size = 0x2000, scoped, tag = 'input window, operand 0, single buffered']
    #allocation4 [shape = 's32[1]{0}', space=sflag, size = 0x4, scoped, tag = 'scoped memory for tpu_custom_call.1']
    #allocation5 [shape = 'u8[131072]{0}', space=vmem, size = 0x20000, scoped, tag = 'input window, operand 1, single buffered']
    #allocation6 [shape = 's32[1]{0}', space=sflag, size = 0x4, scoped, tag = 'scoped memory for tpu_custom_call.1']
    #allocation7 [shape = 'u8[131072]{0}', space=vmem, size = 0x20000, scoped, tag = 'input window, operand 4, single buffered']
    #allocation8 [shape = 'u8[1024]{0}', space=vmem, size = 0x400, scoped, tag = 'input window, operand 6, single buffered']
    #allocation9 [shape = 's32[1]{0}', space=sflag, size = 0x4, scoped, tag = 'scoped memory for tpu_custom_call.1']
    #allocation10 [shape = 'u8[65536]{0}', space=vmem, size = 0x10000, scoped, tag = 'input window, operand 7, single buffered']
    %18 = vsyncpa [#allocation4], 0
    %19 = vsyncpa [#allocation6], 0
    %20 = vsyncpa [#allocation9], 0
    // Predicated region
    $region2: #{tpu_custom_call.1} parent=1 // pred_check
      _
    $region3: #{tpu_custom_call.1} parent=1 // pred_check_branch
      %22 = sbr.rel (0) target = $region5
    $region4: #{tpu_custom_call.1} parent=1 // pred_region
      %24 = vsyncadd [#allocation4], 0
      %s25 = sshll.u32 %s0, 4
      %s26 = int_to_ptr.hbm [resolvable:$true] %s25
      %s27 = sshll.u32 [#allocation3], 4
      %s28 = int_to_ptr.vmem [resolvable:$true] %s27
      %33 = dma.hbm_to_vmem [thread:$0]  %s26, 256, %s28, [#allocation4], 128, 128, 8
    $region5: #{tpu_custom_call.1} parent=1 // pred_fallthru
      _
    // Predicated region
    $region6: #{tpu_custom_call.1} parent=1 // pred_check
      _
    $region7: #{tpu_custom_call.1} parent=1 // pred_check_branch
      %35 = sbr.rel (0) target = $region9
    $region8: #{tpu_custom_call.1} parent=1 // pred_region
      %37 = vsyncadd [#allocation6], 0
      %s38 = sshll.u32 %s1, 4
      %s39 = int_to_ptr.hbm [resolvable:$true] %s38
      %s40 = sshll.u32 [#allocation5], 4
      %s41 = int_to_ptr.vmem [resolvable:$true] %s40
      %46 = dma.hbm_to_vmem [thread:$0]  %s39, 4096, %s41, [#allocation6], 128, 128, 8
    $region9: #{tpu_custom_call.1} parent=1 // pred_fallthru
      _
    // Predicated region
    $region10: #{tpu_custom_call.1} parent=1 // pred_check
      _
    $region11: #{tpu_custom_call.1} parent=1 // pred_check_branch
      %48 = sbr.rel (0) target = $region13
    $region12: #{tpu_custom_call.1} parent=1 // pred_region
      _
    $region13: #{tpu_custom_call.1} parent=1 // pred_fallthru
      _
    // Predicated region
    $region14: #{tpu_custom_call.1} parent=1 // pred_check
      _
    $region15: #{tpu_custom_call.1} parent=1 // pred_check_branch
      %50 = sbr.rel (0) target = $region17
    $region16: #{tpu_custom_call.1} parent=1 // pred_region
      _
    $region17: #{tpu_custom_call.1} parent=1 // pred_fallthru
      _
    // Predicated region
    $region18: #{tpu_custom_call.1} parent=1 // pred_check
      _
    $region19: #{tpu_custom_call.1} parent=1 // pred_check_branch
      %52 = sbr.rel (0) target = $region21
    $region20: #{tpu_custom_call.1} parent=1 // pred_region
      %54 = vsyncadd [#allocation6], 0
      %s55 = sshll.u32 %s4, 4
      %s56 = int_to_ptr.hbm [resolvable:$true] %s55
      %s57 = sshll.u32 [#allocation7], 4
      %s58 = int_to_ptr.vmem [resolvable:$true] %s57
      %63 = dma.hbm_to_vmem [thread:$0]  %s56, 4096, %s58, [#allocation6], 128, 128, 8
    $region21: #{tpu_custom_call.1} parent=1 // pred_fallthru
      _
    // Predicated region
    $region22: #{tpu_custom_call.1} parent=1 // pred_check
      _
    $region23: #{tpu_custom_call.1} parent=1 // pred_check_branch
      %65 = sbr.rel (0) target = $region25
    $region24: #{tpu_custom_call.1} parent=1 // pred_region
      _
    $region25: #{tpu_custom_call.1} parent=1 // pred_fallthru
      _
    // Predicated region
    $region26: #{tpu_custom_call.1} parent=1 // pred_check
      _
    $region27: #{tpu_custom_call.1} parent=1 // pred_check_branch
      %67 = sbr.rel (0) target = $region29
    $region28: #{tpu_custom_call.1} parent=1 // pred_region
      %69 = vsyncadd [#allocation9], 0
      %s71 = sshll.u32 %s6, 4
      %s72 = int_to_ptr.hbm [resolvable:$true] %s71
      %s73 = sshll.u32 [#allocation8], 4
      %s74 = int_to_ptr.vmem [resolvable:$true] %s73
      %76 = dma.hbm_to_vmem [thread:$0]  %s72, 32, %s74, [#allocation9]
    $region29: #{tpu_custom_call.1} parent=1 // pred_fallthru
      _
    // Predicated region
    $region30: #{tpu_custom_call.1} parent=1 // pred_check
      _
    $region31: #{tpu_custom_call.1} parent=1 // pred_check_branch
      %78 = sbr.rel (0) target = $region33
    $region32: #{tpu_custom_call.1} parent=1 // pred_region
      %80 = vsyncadd [#allocation9], 0
      %s81 = sshll.u32 %s7, 4
      %s82 = int_to_ptr.hbm [resolvable:$true] %s81
      %s83 = sshll.u32 [#allocation10], 4
      %s84 = int_to_ptr.vmem [resolvable:$true] %s83
      %89 = dma.hbm_to_vmem [thread:$0]  %s82, 2048, %s84, [#allocation9], 64, 64, 4
    $region33: #{tpu_custom_call.1} parent=1 // pred_fallthru
      _
    // Predicated region
    $region34: #{tpu_custom_call.1} parent=1 // pred_check
      _
    $region35: #{tpu_custom_call.1} parent=1 // pred_check_branch
      %91 = sbr.rel (0) target = $region37
    $region36: #{tpu_custom_call.1} parent=1 // pred_region
      _
    $region37: #{tpu_custom_call.1} parent=1 // pred_fallthru
      _
    // Predicated region
    $region38: #{tpu_custom_call.1} parent=1 // pred_check
      _
    $region39: #{tpu_custom_call.1} parent=1 // pred_check_branch
      %93 = sbr.rel (0) target = $region41
    $region40: #{tpu_custom_call.1} parent=1 // pred_region
      _
    $region41: #{tpu_custom_call.1} parent=1 // pred_fallthru
      _
    // Predicated region
    $region42: #{tpu_custom_call.1} parent=1 // pred_check
      _
    $region43: #{tpu_custom_call.1} parent=1 // pred_check_branch
      %95 = sbr.rel (0) target = $region45
    $region44: #{tpu_custom_call.1} parent=1 // pred_region
      _
    $region45: #{tpu_custom_call.1} parent=1 // pred_fallthru
      _
    // Predicated region
    $region46: #{tpu_custom_call.1} parent=1 // pred_check
      _
    $region47: #{tpu_custom_call.1} parent=1 // pred_check_branch
      %97 = sbr.rel (0) target = $region49
    $region48: #{tpu_custom_call.1} parent=1 // pred_region
      _
    $region49: #{tpu_custom_call.1} parent=1 // pred_fallthru
      _
    // Predicated region
    $region50: #{tpu_custom_call.1} parent=1 // pred_check
      _
    $region51: #{tpu_custom_call.1} parent=1 // pred_check_branch
      %99 = sbr.rel (0) target = $region53
    $region52: #{tpu_custom_call.1} parent=1 // pred_region
      %101 = dma.done [#allocation4], 256
    $region53: #{tpu_custom_call.1} parent=1 // pred_fallthru
      _
    // Predicated region
    $region54: #{tpu_custom_call.1} parent=1 // pred_check
      _
    $region55: #{tpu_custom_call.1} parent=1 // pred_check_branch
      %103 = sbr.rel (0) target = $region57
    $region56: #{tpu_custom_call.1} parent=1 // pred_region
      %105 = dma.done [#allocation6], 4096
    $region57: #{tpu_custom_call.1} parent=1 // pred_fallthru
      _
    // Predicated region
    $region58: #{tpu_custom_call.1} parent=1 // pred_check
      _
    $region59: #{tpu_custom_call.1} parent=1 // pred_check_branch
      %107 = sbr.rel (0) target = $region61
    $region60: #{tpu_custom_call.1} parent=1 // pred_region
      %109 = dma.done [#allocation6], 4096
    $region61: #{tpu_custom_call.1} parent=1 // pred_fallthru
      _
    // Predicated region
    $region62: #{tpu_custom_call.1} parent=1 // pred_check
      _
    $region63: #{tpu_custom_call.1} parent=1 // pred_check_branch
      %111 = sbr.rel (0) target = $region65
    $region64: #{tpu_custom_call.1} parent=1 // pred_region
      %113 = dma.done [#allocation9], 32
    $region65: #{tpu_custom_call.1} parent=1 // pred_fallthru
      _
    // Predicated region
    $region66: #{tpu_custom_call.1} parent=1 // pred_check
      _
    $region67: #{tpu_custom_call.1} parent=1 // pred_check_branch
      %115 = sbr.rel (0) target = $region69
    $region68: #{tpu_custom_call.1} parent=1 // pred_region
      %117 = dma.done [#allocation9], 2048
    $region69: #{tpu_custom_call.1} parent=1 // pred_fallthru
      _
    %v118 = vld [vmem:[#allocation3] sm:$0xff]
    %v119 = vld [vmem:[#allocation3 + $0x8] sm:$0xff]
    %v120 = vld [vmem:[#allocation5] sm:$0xff]
    %v121 = vld [vmem:[#allocation5 + $0x8] sm:$0xff]
    %v122 = vld [vmem:[#allocation5 + $0x10] sm:$0xff]
    %v123 = vld [vmem:[#allocation5 + $0x18] sm:$0xff]
    %v124 = vld [vmem:[#allocation5 + $0x20] sm:$0xff]
    %v125 = vld [vmem:[#allocation5 + $0x28] sm:$0xff]
    %v126 = vld [vmem:[#allocation5 + $0x30] sm:$0xff]
    %v127 = vld [vmem:[#allocation5 + $0x38] sm:$0xff]
    %v128 = vld [vmem:[#allocation5 + $0x40] sm:$0xff]
    %v129 = vld [vmem:[#allocation5 + $0x48] sm:$0xff]
    %v130 = vld [vmem:[#allocation5 + $0x50] sm:$0xff]
    %v131 = vld [vmem:[#allocation5 + $0x58] sm:$0xff]
    %v132 = vld [vmem:[#allocation5 + $0x60] sm:$0xff]
    %v133 = vld [vmem:[#allocation5 + $0x68] sm:$0xff]
    %v134 = vld [vmem:[#allocation5 + $0x70] sm:$0xff]
    %v135 = vld [vmem:[#allocation5 + $0x78] sm:$0xff]
    %v136 = vld [vmem:[#allocation5 + $0x80] sm:$0xff]
    %v137 = vld [vmem:[#allocation5 + $0x88] sm:$0xff]
    %v138 = vld [vmem:[#allocation5 + $0x90] sm:$0xff]
    %v139 = vld [vmem:[#allocation5 + $0x98] sm:$0xff]
    %v140 = vld [vmem:[#allocation5 + $0xa0] sm:$0xff]
    %v141 = vld [vmem:[#allocation5 + $0xa8] sm:$0xff]
    %v142 = vld [vmem:[#allocation5 + $0xb0] sm:$0xff]
    %v143 = vld [vmem:[#allocation5 + $0xb8] sm:$0xff]
    %v144 = vld [vmem:[#allocation5 + $0xc0] sm:$0xff]
    %v145 = vld [vmem:[#allocation5 + $0xc8] sm:$0xff]
    %v146 = vld [vmem:[#allocation5 + $0xd0] sm:$0xff]
    %v147 = vld [vmem:[#allocation5 + $0xd8] sm:$0xff]
    %v148 = vld [vmem:[#allocation5 + $0xe0] sm:$0xff]
    %v149 = vld [vmem:[#allocation5 + $0xe8] sm:$0xff]
    %v150 = vld [vmem:[#allocation5 + $0xf0] sm:$0xff]
    %v151 = vld [vmem:[#allocation5 + $0xf8] sm:$0xff]
    %v152 = vld [vmem:[%s2] sm:$0x3]
    %v154 = vperm.slane %v152, 0
    %v155 = vperm.slane %v152, 1
    %v160 = vunpack.c.l.b16 %v118
    %v161 = vunpack.c.h.b16 %v118
    %v162 = vunpack.c.l.b16 %v119
    %v163 = vunpack.c.h.b16 %v119
    %v164 = vpack.c.b16 %v162, %v160
    %v165 = vpack.c.b16 %v163, %v161
    %v200 = vunpack.c.l.b16 %v120
    %v201 = vunpack.c.h.b16 %v120
    %v202 = vunpack.c.l.b16 %v121
    %v203 = vunpack.c.h.b16 %v121
    %v204 = vunpack.c.l.b16 %v122
    %v205 = vunpack.c.h.b16 %v122
    %v206 = vunpack.c.l.b16 %v123
    %v207 = vunpack.c.h.b16 %v123
    %v208 = vunpack.c.l.b16 %v124
    %v209 = vunpack.c.h.b16 %v124
    %v210 = vunpack.c.l.b16 %v125
    %v211 = vunpack.c.h.b16 %v125
    %v212 = vunpack.c.l.b16 %v126
    %v213 = vunpack.c.h.b16 %v126
    %v214 = vunpack.c.l.b16 %v127
    %v215 = vunpack.c.h.b16 %v127
    %v216 = vunpack.c.l.b16 %v128
    %v217 = vunpack.c.h.b16 %v128
    %v218 = vunpack.c.l.b16 %v129
    %v219 = vunpack.c.h.b16 %v129
    %v220 = vunpack.c.l.b16 %v130
    %v221 = vunpack.c.h.b16 %v130
    %v222 = vunpack.c.l.b16 %v131
    %v223 = vunpack.c.h.b16 %v131
    %v224 = vunpack.c.l.b16 %v132
    %v225 = vunpack.c.h.b16 %v132
    %v226 = vunpack.c.l.b16 %v133
    %v227 = vunpack.c.h.b16 %v133
    %v228 = vunpack.c.l.b16 %v134
    %v229 = vunpack.c.h.b16 %v134
    %v230 = vunpack.c.l.b16 %v135
    %v231 = vunpack.c.h.b16 %v135
    %v232 = vunpack.c.l.b16 %v136
    %v233 = vunpack.c.h.b16 %v136
    %v234 = vunpack.c.l.b16 %v137
    %v235 = vunpack.c.h.b16 %v137
    %v236 = vunpack.c.l.b16 %v138
    %v237 = vunpack.c.h.b16 %v138
    %v238 = vunpack.c.l.b16 %v139
    %v239 = vunpack.c.h.b16 %v139
    %v240 = vunpack.c.l.b16 %v140
    %v241 = vunpack.c.h.b16 %v140
    %v242 = vunpack.c.l.b16 %v141
    %v243 = vunpack.c.h.b16 %v141
    %v244 = vunpack.c.l.b16 %v142
    %v245 = vunpack.c.h.b16 %v142
    %v246 = vunpack.c.l.b16 %v143
    %v247 = vunpack.c.h.b16 %v143
    %v248 = vunpack.c.l.b16 %v144
    %v249 = vunpack.c.h.b16 %v144
    %v250 = vunpack.c.l.b16 %v145
    %v251 = vunpack.c.h.b16 %v145
    %v252 = vunpack.c.l.b16 %v146
    %v253 = vunpack.c.h.b16 %v146
    %v254 = vunpack.c.l.b16 %v147
    %v255 = vunpack.c.h.b16 %v147
    %v256 = vunpack.c.l.b16 %v148
    %v257 = vunpack.c.h.b16 %v148
    %v258 = vunpack.c.l.b16 %v149
    %v259 = vunpack.c.h.b16 %v149
    %v260 = vunpack.c.l.b16 %v150
    %v261 = vunpack.c.h.b16 %v150
    %v262 = vunpack.c.l.b16 %v151
    %v263 = vunpack.c.h.b16 %v151
    %v264 = vpack.c.b16 %v202, %v200
    %v265 = vpack.c.b16 %v203, %v201
    %v266 = vpack.c.b16 %v206, %v204
    %v267 = vpack.c.b16 %v207, %v205
    %v268 = vpack.c.b16 %v210, %v208
    %v269 = vpack.c.b16 %v211, %v209
    %v270 = vpack.c.b16 %v214, %v212
    %v271 = vpack.c.b16 %v215, %v213
    %v272 = vpack.c.b16 %v218, %v216
    %v273 = vpack.c.b16 %v219, %v217
    %v274 = vpack.c.b16 %v222, %v220
    %v275 = vpack.c.b16 %v223, %v221
    %v276 = vpack.c.b16 %v226, %v224
    %v277 = vpack.c.b16 %v227, %v225
    %v278 = vpack.c.b16 %v230, %v228
    %v279 = vpack.c.b16 %v231, %v229
    %v280 = vpack.c.b16 %v234, %v232
    %v281 = vpack.c.b16 %v235, %v233
    %v282 = vpack.c.b16 %v238, %v236
    %v283 = vpack.c.b16 %v239, %v237
    %v284 = vpack.c.b16 %v242, %v240
    %v285 = vpack.c.b16 %v243, %v241
    %v286 = vpack.c.b16 %v246, %v244
    %v287 = vpack.c.b16 %v247, %v245
    %v288 = vpack.c.b16 %v250, %v248
    %v289 = vpack.c.b16 %v251, %v249
    %v290 = vpack.c.b16 %v254, %v252
    %v291 = vpack.c.b16 %v255, %v253
    %v292 = vpack.c.b16 %v258, %v256
    %v293 = vpack.c.b16 %v259, %v257
    %v294 = vpack.c.b16 %v262, %v260
    %v295 = vpack.c.b16 %v263, %v261
    %328 = vmatpush.bf16.msra.mxu0 %v278
    %329 = vmatpush.bf16.msra.mxu0 %v276
    %330 = vmatpush.bf16.msra.mxu0 %v274
    %331 = vmatpush.bf16.msra.mxu0 %v272
    %332 = vmatpush.bf16.msra.mxu0 %v270
    %333 = vmatpush.bf16.msra.mxu0 %v268
    %334 = vmatpush.bf16.msra.mxu0 %v266
    %335 = vmatpush.bf16.msra.mxu0 %v264
    %336 = vmatmul.bf16.gmra.mxu0 %v164
    %v337 = vpop.f32.mrf.mxu0
    %v338 = vadd.f32 %v154, %v337
    %v339 = vpop.f32.mrf.mxu0
    %v340 = vadd.f32 %v154, %v339
    %341 = vdwg.mxu0
    %342 = vmatpush.bf16.msra.mxu0 %v294
    %343 = vmatpush.bf16.msra.mxu0 %v292
    %344 = vmatpush.bf16.msra.mxu0 %v290
    %345 = vmatpush.bf16.msra.mxu0 %v288
    %346 = vmatpush.bf16.msra.mxu0 %v286
    %347 = vmatpush.bf16.msra.mxu0 %v284
    %348 = vmatpush.bf16.msra.mxu0 %v282
    %349 = vmatpush.bf16.msra.mxu0 %v280
    %350 = vmatmul.bf16.gmra.mxu0 %v165
    %v351 = vpop.f32.mrf.mxu0
    %v352 = vadd.f32 %v338, %v351
    %v353 = vpop.f32.mrf.mxu0
    %v354 = vadd.f32 %v340, %v353
    %355 = vdwg.mxu0
    %356 = vmatpush.bf16.msra.mxu0 %v279
    %357 = vmatpush.bf16.msra.mxu0 %v277
    %358 = vmatpush.bf16.msra.mxu0 %v275
    %359 = vmatpush.bf16.msra.mxu0 %v273
    %360 = vmatpush.bf16.msra.mxu0 %v271
    %361 = vmatpush.bf16.msra.mxu0 %v269
    %362 = vmatpush.bf16.msra.mxu0 %v267
    %363 = vmatpush.bf16.msra.mxu0 %v265
    %364 = vmatmul.bf16.gmra.mxu0 %v164
    %v365 = vpop.f32.mrf.mxu0
    %v366 = vadd.f32 %v155, %v365
    %v367 = vpop.f32.mrf.mxu0
    %v368 = vadd.f32 %v155, %v367
    %369 = vdwg.mxu0
    %370 = vmatpush.bf16.msra.mxu0 %v295
    %371 = vmatpush.bf16.msra.mxu0 %v293
    %372 = vmatpush.bf16.msra.mxu0 %v291
    %373 = vmatpush.bf16.msra.mxu0 %v289
    %374 = vmatpush.bf16.msra.mxu0 %v287
    %375 = vmatpush.bf16.msra.mxu0 %v285
    %376 = vmatpush.bf16.msra.mxu0 %v283
    %377 = vmatpush.bf16.msra.mxu0 %v281
    %378 = vmatmul.bf16.gmra.mxu0 %v165
    %v379 = vpop.f32.mrf.mxu0
    %v380 = vadd.f32 %v366, %v379
    %v381 = vpop.f32.mrf.mxu0
    %v382 = vadd.f32 %v368, %v381
    %383 = vdwg.mxu0
    %v384 = vld [vmem:[%s3] sm:$0x3]
    %v386 = vperm.slane %v384, 0
    %v387 = vperm.slane %v384, 1
    %v390 = vmax.f32 %v352, %v386
    %v391 = vmax.f32 %v380, %v387
    %v392 = vmax.f32 %v354, %v386
    %v393 = vmax.f32 %v382, %v387
    %v394 = vpack.c.bf16 %v392, %v390
    %v395 = vpack.c.bf16 %v393, %v391
    %v396 = vld [vmem:[#allocation7] sm:$0xff]
    %v397 = vld [vmem:[#allocation7 + $0x8] sm:$0xff]
    %v398 = vld [vmem:[#allocation7 + $0x10] sm:$0xff]
    %v399 = vld [vmem:[#allocation7 + $0x18] sm:$0xff]
    %v400 = vld [vmem:[#allocation7 + $0x20] sm:$0xff]
    %v401 = vld [vmem:[#allocation7 + $0x28] sm:$0xff]
    %v402 = vld [vmem:[#allocation7 + $0x30] sm:$0xff]
    %v403 = vld [vmem:[#allocation7 + $0x38] sm:$0xff]
    %v404 = vld [vmem:[#allocation7 + $0x40] sm:$0xff]
    %v405 = vld [vmem:[#allocation7 + $0x48] sm:$0xff]
    %v406 = vld [vmem:[#allocation7 + $0x50] sm:$0xff]
    %v407 = vld [vmem:[#allocation7 + $0x58] sm:$0xff]
    %v408 = vld [vmem:[#allocation7 + $0x60] sm:$0xff]
    %v409 = vld [vmem:[#allocation7 + $0x68] sm:$0xff]
    %v410 = vld [vmem:[#allocation7 + $0x70] sm:$0xff]
    %v411 = vld [vmem:[#allocation7 + $0x78] sm:$0xff]
    %v412 = vld [vmem:[#allocation7 + $0x80] sm:$0xff]
    %v413 = vld [vmem:[#allocation7 + $0x88] sm:$0xff]
    %v414 = vld [vmem:[#allocation7 + $0x90] sm:$0xff]
    %v415 = vld [vmem:[#allocation7 + $0x98] sm:$0xff]
    %v416 = vld [vmem:[#allocation7 + $0xa0] sm:$0xff]
    %v417 = vld [vmem:[#allocation7 + $0xa8] sm:$0xff]
    %v418 = vld [vmem:[#allocation7 + $0xb0] sm:$0xff]
    %v419 = vld [vmem:[#allocation7 + $0xb8] sm:$0xff]
    %v420 = vld [vmem:[#allocation7 + $0xc0] sm:$0xff]
    %v421 = vld [vmem:[#allocation7 + $0xc8] sm:$0xff]
    %v422 = vld [vmem:[#allocation7 + $0xd0] sm:$0xff]
    %v423 = vld [vmem:[#allocation7 + $0xd8] sm:$0xff]
    %v424 = vld [vmem:[#allocation7 + $0xe0] sm:$0xff]
    %v425 = vld [vmem:[#allocation7 + $0xe8] sm:$0xff]
    %v426 = vld [vmem:[#allocation7 + $0xf0] sm:$0xff]
    %v427 = vld [vmem:[#allocation7 + $0xf8] sm:$0xff]
    %v428 = vld [vmem:[%s5] sm:$0x3]
    %v430 = vperm.slane %v428, 0
    %v431 = vperm.slane %v428, 1
    %v466 = vunpack.c.l.b16 %v396
    %v467 = vunpack.c.h.b16 %v396
    %v468 = vunpack.c.l.b16 %v397
    %v469 = vunpack.c.h.b16 %v397
    %v470 = vunpack.c.l.b16 %v398
    %v471 = vunpack.c.h.b16 %v398
    %v472 = vunpack.c.l.b16 %v399
    %v473 = vunpack.c.h.b16 %v399
    %v474 = vunpack.c.l.b16 %v400
    %v475 = vunpack.c.h.b16 %v400
    %v476 = vunpack.c.l.b16 %v401
    %v477 = vunpack.c.h.b16 %v401
    %v478 = vunpack.c.l.b16 %v402
    %v479 = vunpack.c.h.b16 %v402
    %v480 = vunpack.c.l.b16 %v403
    %v481 = vunpack.c.h.b16 %v403
    %v482 = vunpack.c.l.b16 %v404
    %v483 = vunpack.c.h.b16 %v404
    %v484 = vunpack.c.l.b16 %v405
    %v485 = vunpack.c.h.b16 %v405
    %v486 = vunpack.c.l.b16 %v406
    %v487 = vunpack.c.h.b16 %v406
    %v488 = vunpack.c.l.b16 %v407
    %v489 = vunpack.c.h.b16 %v407
    %v490 = vunpack.c.l.b16 %v408
    %v491 = vunpack.c.h.b16 %v408
    %v492 = vunpack.c.l.b16 %v409
    %v493 = vunpack.c.h.b16 %v409
    %v494 = vunpack.c.l.b16 %v410
    %v495 = vunpack.c.h.b16 %v410
    %v496 = vunpack.c.l.b16 %v411
    %v497 = vunpack.c.h.b16 %v411
    %v498 = vunpack.c.l.b16 %v412
    %v499 = vunpack.c.h.b16 %v412
    %v500 = vunpack.c.l.b16 %v413
    %v501 = vunpack.c.h.b16 %v413
    %v502 = vunpack.c.l.b16 %v414
    %v503 = vunpack.c.h.b16 %v414
    %v504 = vunpack.c.l.b16 %v415
    %v505 = vunpack.c.h.b16 %v415
    %v506 = vunpack.c.l.b16 %v416
    %v507 = vunpack.c.h.b16 %v416
    %v508 = vunpack.c.l.b16 %v417
    %v509 = vunpack.c.h.b16 %v417
    %v510 = vunpack.c.l.b16 %v418
    %v511 = vunpack.c.h.b16 %v418
    %v512 = vunpack.c.l.b16 %v419
    %v513 = vunpack.c.h.b16 %v419
    %v514 = vunpack.c.l.b16 %v420
    %v515 = vunpack.c.h.b16 %v420
    %v516 = vunpack.c.l.b16 %v421
    %v517 = vunpack.c.h.b16 %v421
    %v518 = vunpack.c.l.b16 %v422
    %v519 = vunpack.c.h.b16 %v422
    %v520 = vunpack.c.l.b16 %v423
    %v521 = vunpack.c.h.b16 %v423
    %v522 = vunpack.c.l.b16 %v424
    %v523 = vunpack.c.h.b16 %v424
    %v524 = vunpack.c.l.b16 %v425
    %v525 = vunpack.c.h.b16 %v425
    %v526 = vunpack.c.l.b16 %v426
    %v527 = vunpack.c.h.b16 %v426
    %v528 = vunpack.c.l.b16 %v427
    %v529 = vunpack.c.h.b16 %v427
    %v530 = vpack.c.b16 %v468, %v466
    %v531 = vpack.c.b16 %v469, %v467
    %v532 = vpack.c.b16 %v472, %v470
    %v533 = vpack.c.b16 %v473, %v471
    %v534 = vpack.c.b16 %v476, %v474
    %v535 = vpack.c.b16 %v477, %v475
    %v536 = vpack.c.b16 %v480, %v478
    %v537 = vpack.c.b16 %v481, %v479
    %v538 = vpack.c.b16 %v484, %v482
    %v539 = vpack.c.b16 %v485, %v483
    %v540 = vpack.c.b16 %v488, %v486
    %v541 = vpack.c.b16 %v489, %v487
    %v542 = vpack.c.b16 %v492, %v490
    %v543 = vpack.c.b16 %v493, %v491
    %v544 = vpack.c.b16 %v496, %v494
    %v545 = vpack.c.b16 %v497, %v495
    %v546 = vpack.c.b16 %v500, %v498
    %v547 = vpack.c.b16 %v501, %v499
    %v548 = vpack.c.b16 %v504, %v502
    %v549 = vpack.c.b16 %v505, %v503
    %v550 = vpack.c.b16 %v508, %v506
    %v551 = vpack.c.b16 %v509, %v507
    %v552 = vpack.c.b16 %v512, %v510
    %v553 = vpack.c.b16 %v513, %v511
    %v554 = vpack.c.b16 %v516, %v514
    %v555 = vpack.c.b16 %v517, %v515
    %v556 = vpack.c.b16 %v520, %v518
    %v557 = vpack.c.b16 %v521, %v519
    %v558 = vpack.c.b16 %v524, %v522
    %v559 = vpack.c.b16 %v525, %v523
    %v560 = vpack.c.b16 %v528, %v526
    %v561 = vpack.c.b16 %v529, %v527
    %594 = vmatpush.bf16.msra.mxu0 %v544
    %595 = vmatpush.bf16.msra.mxu0 %v542
    %596 = vmatpush.bf16.msra.mxu0 %v540
    %597 = vmatpush.bf16.msra.mxu0 %v538
    %598 = vmatpush.bf16.msra.mxu0 %v536
    %599 = vmatpush.bf16.msra.mxu0 %v534
    %600 = vmatpush.bf16.msra.mxu0 %v532
    %601 = vmatpush.bf16.msra.mxu0 %v530
    %602 = vmatmul.bf16.gmra.mxu0 %v394
    %v603 = vpop.f32.mrf.mxu0
    %v604 = vadd.f32 %v430, %v603
    %v605 = vpop.f32.mrf.mxu0
    %v606 = vadd.f32 %v430, %v605
    %607 = vdwg.mxu0
    %608 = vmatpush.bf16.msra.mxu0 %v560
    %609 = vmatpush.bf16.msra.mxu0 %v558
    %610 = vmatpush.bf16.msra.mxu0 %v556
    %611 = vmatpush.bf16.msra.mxu0 %v554
    %612 = vmatpush.bf16.msra.mxu0 %v552
    %613 = vmatpush.bf16.msra.mxu0 %v550
    %614 = vmatpush.bf16.msra.mxu0 %v548
    %615 = vmatpush.bf16.msra.mxu0 %v546
    %616 = vmatmul.bf16.gmra.mxu0 %v395
    %v617 = vpop.f32.mrf.mxu0
    %v618 = vadd.f32 %v604, %v617
    %v619 = vpop.f32.mrf.mxu0
    %v620 = vadd.f32 %v606, %v619
    %621 = vdwg.mxu0
    %622 = vmatpush.bf16.msra.mxu0 %v545
    %623 = vmatpush.bf16.msra.mxu0 %v543
    %624 = vmatpush.bf16.msra.mxu0 %v541
    %625 = vmatpush.bf16.msra.mxu0 %v539
    %626 = vmatpush.bf16.msra.mxu0 %v537
    %627 = vmatpush.bf16.msra.mxu0 %v535
    %628 = vmatpush.bf16.msra.mxu0 %v533
    %629 = vmatpush.bf16.msra.mxu0 %v531
    %630 = vmatmul.bf16.gmra.mxu0 %v394
    %v631 = vpop.f32.mrf.mxu0
    %v632 = vadd.f32 %v431, %v631
    %v633 = vpop.f32.mrf.mxu0
    %v634 = vadd.f32 %v431, %v633
    %635 = vdwg.mxu0
    %636 = vmatpush.bf16.msra.mxu0 %v561
    %637 = vmatpush.bf16.msra.mxu0 %v559
    %638 = vmatpush.bf16.msra.mxu0 %v557
    %639 = vmatpush.bf16.msra.mxu0 %v555
    %640 = vmatpush.bf16.msra.mxu0 %v553
    %641 = vmatpush.bf16.msra.mxu0 %v551
    %642 = vmatpush.bf16.msra.mxu0 %v549
    %643 = vmatpush.bf16.msra.mxu0 %v547
    %644 = vmatmul.bf16.gmra.mxu0 %v395
    %v645 = vpop.f32.mrf.mxu0
    %v646 = vadd.f32 %v632, %v645
    %v647 = vpop.f32.mrf.mxu0
    %v648 = vadd.f32 %v634, %v647
    %649 = vdwg.mxu0
    %v650 = vld [vmem:[#allocation8] sm:$0x3]
    %v652 = vperm.slane %v650, 0
    %v653 = vperm.slane %v650, 1
    %v656 = vmax.f32 %v618, %v652
    %v657 = vmax.f32 %v646, %v653
    %v658 = vmax.f32 %v620, %v652
    %v659 = vmax.f32 %v648, %v653
    %v660 = vpack.c.bf16 %v658, %v656
    %v661 = vpack.c.bf16 %v659, %v657
    %v662 = vld [vmem:[#allocation10] sm:$0xf]
    %v663 = vld [vmem:[#allocation10 + $0x4] sm:$0xf]
    %v664 = vld [vmem:[#allocation10 + $0x8] sm:$0xf]
    %v665 = vld [vmem:[#allocation10 + $0xc] sm:$0xf]
    %v666 = vld [vmem:[#allocation10 + $0x10] sm:$0xf]
    %v667 = vld [vmem:[#allocation10 + $0x14] sm:$0xf]
    %v668 = vld [vmem:[#allocation10 + $0x18] sm:$0xf]
    %v669 = vld [vmem:[#allocation10 + $0x1c] sm:$0xf]
    %v670 = vld [vmem:[#allocation10 + $0x20] sm:$0xf]
    %v671 = vld [vmem:[#allocation10 + $0x24] sm:$0xf]
    %v672 = vld [vmem:[#allocation10 + $0x28] sm:$0xf]
    %v673 = vld [vmem:[#allocation10 + $0x2c] sm:$0xf]
    %v674 = vld [vmem:[#allocation10 + $0x30] sm:$0xf]
    %v675 = vld [vmem:[#allocation10 + $0x34] sm:$0xf]
    %v676 = vld [vmem:[#allocation10 + $0x38] sm:$0xf]
    %v677 = vld [vmem:[#allocation10 + $0x3c] sm:$0xf]
    %v678 = vld [vmem:[#allocation10 + $0x40] sm:$0xf]
    %v679 = vld [vmem:[#allocation10 + $0x44] sm:$0xf]
    %v680 = vld [vmem:[#allocation10 + $0x48] sm:$0xf]
    %v681 = vld [vmem:[#allocation10 + $0x4c] sm:$0xf]
    %v682 = vld [vmem:[#allocation10 + $0x50] sm:$0xf]
    %v683 = vld [vmem:[#allocation10 + $0x54] sm:$0xf]
    %v684 = vld [vmem:[#allocation10 + $0x58] sm:$0xf]
    %v685 = vld [vmem:[#allocation10 + $0x5c] sm:$0xf]
    %v686 = vld [vmem:[#allocation10 + $0x60] sm:$0xf]
    %v687 = vld [vmem:[#allocation10 + $0x64] sm:$0xf]
    %v688 = vld [vmem:[#allocation10 + $0x68] sm:$0xf]
    %v689 = vld [vmem:[#allocation10 + $0x6c] sm:$0xf]
    %v690 = vld [vmem:[#allocation10 + $0x70] sm:$0xf]
    %v691 = vld [vmem:[#allocation10 + $0x74] sm:$0xf]
    %v692 = vld [vmem:[#allocation10 + $0x78] sm:$0xf]
    %v693 = vld [vmem:[#allocation10 + $0x7c] sm:$0xf]
    %v694 = vld [vmem:[%s8] sm:$0x1]
    %v696 = vperm.slane %v694, 0
    %v730 = vunpack.c.l.b16 %v662
    %v731 = vunpack.c.l.b16 %v663
    %v732 = vunpack.c.l.b16 %v664
    %v733 = vunpack.c.l.b16 %v665
    %v734 = vunpack.c.l.b16 %v666
    %v735 = vunpack.c.l.b16 %v667
    %v736 = vunpack.c.l.b16 %v668
    %v737 = vunpack.c.l.b16 %v669
    %v738 = vunpack.c.l.b16 %v670
    %v739 = vunpack.c.l.b16 %v671
    %v740 = vunpack.c.l.b16 %v672
    %v741 = vunpack.c.l.b16 %v673
    %v742 = vunpack.c.l.b16 %v674
    %v743 = vunpack.c.l.b16 %v675
    %v744 = vunpack.c.l.b16 %v676
    %v745 = vunpack.c.l.b16 %v677
    %v746 = vunpack.c.l.b16 %v678
    %v747 = vunpack.c.l.b16 %v679
    %v748 = vunpack.c.l.b16 %v680
    %v749 = vunpack.c.l.b16 %v681
    %v750 = vunpack.c.l.b16 %v682
    %v751 = vunpack.c.l.b16 %v683
    %v752 = vunpack.c.l.b16 %v684
    %v753 = vunpack.c.l.b16 %v685
    %v754 = vunpack.c.l.b16 %v686
    %v755 = vunpack.c.l.b16 %v687
    %v756 = vunpack.c.l.b16 %v688
    %v757 = vunpack.c.l.b16 %v689
    %v758 = vunpack.c.l.b16 %v690
    %v759 = vunpack.c.l.b16 %v691
    %v760 = vunpack.c.l.b16 %v692
    %v761 = vunpack.c.l.b16 %v693
    %v762 = vpack.c.b16 %v731, %v730
    %v763 = vpack.c.b16 %v733, %v732
    %v764 = vpack.c.b16 %v735, %v734
    %v765 = vpack.c.b16 %v737, %v736
    %v766 = vpack.c.b16 %v739, %v738
    %v767 = vpack.c.b16 %v741, %v740
    %v768 = vpack.c.b16 %v743, %v742
    %v769 = vpack.c.b16 %v745, %v744
    %v770 = vpack.c.b16 %v747, %v746
    %v771 = vpack.c.b16 %v749, %v748
    %v772 = vpack.c.b16 %v751, %v750
    %v773 = vpack.c.b16 %v753, %v752
    %v774 = vpack.c.b16 %v755, %v754
    %v775 = vpack.c.b16 %v757, %v756
    %v776 = vpack.c.b16 %v759, %v758
    %v777 = vpack.c.b16 %v761, %v760
    %794 = vmatpush.bf16.msra.mxu0 %v769
    %795 = vmatpush.bf16.msra.mxu0 %v768
    %796 = vmatpush.bf16.msra.mxu0 %v767
    %797 = vmatpush.bf16.msra.mxu0 %v766
    %798 = vmatpush.bf16.msra.mxu0 %v765
    %799 = vmatpush.bf16.msra.mxu0 %v764
    %800 = vmatpush.bf16.msra.mxu0 %v763
    %801 = vmatpush.bf16.msra.mxu0 %v762
    %802 = vmatmul.bf16.gmra.mxu0 %v660
    %v803 = vpop.f32.mrf.mxu0
    %v804 = vadd.f32 %v696, %v803
    %v805 = vpop.f32.mrf.mxu0
    %v806 = vadd.f32 %v696, %v805
    %807 = vdwg.mxu0
    %808 = vmatpush.bf16.msra.mxu0 %v777
    %809 = vmatpush.bf16.msra.mxu0 %v776
    %810 = vmatpush.bf16.msra.mxu0 %v775
    %811 = vmatpush.bf16.msra.mxu0 %v774
    %812 = vmatpush.bf16.msra.mxu0 %v773
    %813 = vmatpush.bf16.msra.mxu0 %v772
    %814 = vmatpush.bf16.msra.mxu0 %v771
    %815 = vmatpush.bf16.msra.mxu0 %v770
    %816 = vmatmul.bf16.gmra.mxu0 %v661
    %v817 = vpop.f32.mrf.mxu0
    %v818 = vadd.f32 %v804, %v817
    %v819 = vpop.f32.mrf.mxu0
    %v820 = vadd.f32 %v806, %v819
    %821 = vdwg.mxu0
    %v822 = vmax.f32 %v818, 0.0
    %v823 = vmax.f32 %v820, 0.0
    %v824 = vld [vmem:[%s9] sm:$0x3]
    %v826 = vperm.slane %v824, 0
    %v827 = vperm.slane %v824, 1
    %v830 = vmul.f32 %v656, %v826
    %v831 = vmul.f32 %v657, %v827
    %v832 = vmul.f32 %v658, %v826
    %v833 = vmul.f32 %v659, %v827
    %v834 = vadd.f32 %v830, %v831
    %835 = vadd.xlane.f32.xlu0 %v834
    %v836 = vpop.xlane.xlu0 %835
    %v837 = vadd.f32 %v832, %v833
    %838 = vadd.xlane.f32.xlu0 %v837
    %v839 = vpop.xlane.xlu0 %838
    %v840 = vld [vmem:[%s10] sm:$0x1]
    %v842 = vperm.slane %v840, 0
    %v844 = vmul.f32 %v822, %v842
    %v845 = vmul.f32 %v823, %v842
    %846 = vadd.xlane.f32.xlu0 %v844
    %v847 = vpop.xlane.xlu0 %846
    %848 = vadd.xlane.f32.xlu0 %v845
    %v849 = vpop.xlane.xlu0 %848
    %v850 = vadd.f32 %v836, %v847
    %v851 = vadd.f32 %v839, %v849
    %s852 = sld [smem:[#allocation2]]
    %v853 = vstv %s852
    %v854 = vadd.f32 %v850, %v853
    %v855 = vadd.f32 %v851, %v853
    %v856 = vtanh.pop %v854
    %v857 = vtanh.pop %v855
    %vm858 = vcmask 7168
    %859 = vst.msk [vmem:[%s12] sm:$0xff] %vm858, %v856
    %860 = vst.msk [vmem:[%s12 + $0x8] sm:$0xff] %vm858, %v857
    // Predicated region
    $region70: #{tpu_custom_call.1} parent=1 // pred_check
      _
    $region71: #{tpu_custom_call.1} parent=1 // pred_check_branch
      %862 = sbr.rel (0) target = $region73
    $region72: #{tpu_custom_call.1} parent=1 // pred_region
      _
    $region73: #{tpu_custom_call.1} parent=1 // pred_fallthru
      _
    // Predicated region
    $region74: #{tpu_custom_call.1} parent=1 // pred_check
      _
    $region75: #{tpu_custom_call.1} parent=1 // pred_check_branch
      %864 = sbr.rel (0) target = $region77
    $region76: #{tpu_custom_call.1} parent=1 // pred_region
      _
    $region77: #{tpu_custom_call.1} parent=1 // pred_fallthru
      _
    %865 = vsyncpa [#allocation4], 1
    %866 = vsyncpa [#allocation6], 1
    %867 = vsyncpa [#allocation9], 1

</llo_original>
